<compile_context>
chip_gen: v7x
topology: tpu7x:2x2x1
jax: 0.10.0
libtpu: 0.0.40
codegen_flags: <defaults>
</compile_context>

<pallas_src>
import jax
import jax.numpy as jnp
from jax import lax
from jax.experimental import pallas as pl
from jax.experimental.pallas import tpu as pltpu


def _concat_offset_kernel(a_ref, b_ref, o_ref):
    """o = concat(A, B) with A[0]+5 and B[1]+10, as one add + one store."""
    na = a_ref.shape[-1]

    # Single concatenated lane-dense row (1, NA + NB).
    row = jnp.concatenate([a_ref[...], b_ref[...]], axis=-1)

    # One offset row: +5 at lane 0 (A[0]), +10 at lane NA+1 (B[1]).
    col = lax.broadcasted_iota(jnp.int32, row.shape, dimension=1)
    offsets = jnp.where(col == 0, 5, jnp.where(col == na + 1, 10, 0)).astype(
        row.dtype
    )

    # One full-row store (no masked partial stores).
    o_ref[...] = row + offsets


def mytest3_forward(a: jax.Array, b: jax.Array) -> jax.Array:
    assert a.ndim == 1 and b.ndim == 1, "MyTest3 semantics require 1-D inputs"
    assert a.shape[0] >= 1 and b.shape[0] >= 2, "need A[0] and B[1] to exist"
    na, nb = a.shape[0], b.shape[0]
    out_dtype = jnp.result_type(a.dtype, b.dtype)

    # Lane-dense 2-D views: last dim -> lanes (single row, full-array blocks).
    a2 = a.astype(out_dtype).reshape(1, na)
    b2 = b.astype(out_dtype).reshape(1, nb)

    out = pl.pallas_call(
        _concat_offset_kernel,
        out_shape=jax.ShapeDtypeStruct((1, na + nb), out_dtype),
        in_specs=[
            pl.BlockSpec(memory_space=pltpu.MemorySpace.VMEM),
            pl.BlockSpec(memory_space=pltpu.MemorySpace.VMEM),
        ],
        out_specs=pl.BlockSpec(memory_space=pltpu.MemorySpace.VMEM),
    )(a2, b2)

    return out.reshape(na + nb)


if __name__ == "__main__":
    key = jax.random.PRNGKey(0)
    k1, k2 = jax.random.split(key)
    # Small 1-D inputs consistent with the module (tolist-based): seq=8 each.
    A = jax.random.normal(k1, (8,), dtype=jnp.float32)
    B = jax.random.normal(k2, (8,), dtype=jnp.float32)

    out = mytest3_forward(A, B)
    jax.block_until_ready(out)

    # Reference: concat(A with A[0]+5, B with B[1]+10)
    ref = jnp.concatenate([A.at[0].add(5.0), B.at[1].add(10.0)])
    assert out.shape == (A.shape[0] + B.shape[0],)
    assert jnp.allclose(out, ref, atol=1e-6, rtol=1e-6), "mismatch vs reference"

    print("KERNEL_OK")
</pallas_src>

<mosaic_0001>
module attributes {stable_mosaic.version = 11 : i64} {
  func.func @_concat_offset_kernel(%arg0: memref<1x8xf32, #tpu.memory_space<vmem>>, %arg1: memref<1x8xf32, #tpu.memory_space<vmem>>, %arg2: memref<1x16xf32, #tpu.memory_space<vmem>>) attributes {dimension_semantics = [], scalar_prefetch = 0 : i64, scratch_operands = 0 : i64, tpu.core_type = #tpu.core_type<tc>} {
    %c0 = arith.constant 0 : index
    %c0_0 = arith.constant 0 : index
    %0 = vector.load %arg0[%c0, %c0_0] : memref<1x8xf32, #tpu.memory_space<vmem>>, vector<1x8xf32>
    %c0_1 = arith.constant 0 : index
    %c0_2 = arith.constant 0 : index
    %1 = vector.load %arg1[%c0_1, %c0_2] : memref<1x8xf32, #tpu.memory_space<vmem>>, vector<1x8xf32>
    %2 = tpu.concatenate %0, %1 in 1 : vector<1x8xf32>, vector<1x8xf32> -> vector<1x16xf32>
    %3 = tpu.iota {dimensions = array<i32: 1>} : vector<1x16xi32>
    %c0_i32 = arith.constant 0 : i32
    %4 = vector.broadcast %c0_i32 : i32 to vector<1x16xi32>
    %5 = arith.cmpi eq, %3, %4 : vector<1x16xi32>
    %c9_i32 = arith.constant 9 : i32
    %6 = vector.broadcast %c9_i32 : i32 to vector<1x16xi32>
    %7 = arith.cmpi eq, %3, %6 : vector<1x16xi32>
    %c10_i32 = arith.constant 10 : i32
    %c0_i32_3 = arith.constant 0 : i32
    %8 = vector.broadcast %c10_i32 : i32 to vector<1x16xi32>
    %9 = vector.broadcast %c0_i32_3 : i32 to vector<1x16xi32>
    %10 = arith.select %7, %8, %9 : vector<1x16xi1>, vector<1x16xi32>
    %c5_i32 = arith.constant 5 : i32
    %11 = vector.broadcast %c5_i32 : i32 to vector<1x16xi32>
    %12 = arith.select %5, %11, %10 : vector<1x16xi1>, vector<1x16xi32>
    %13 = arith.sitofp %12 : vector<1x16xi32> to vector<1x16xf32>
    %14 = arith.addf %2, %13 : vector<1x16xf32>
    %c0_4 = arith.constant 0 : index
    %c0_5 = arith.constant 0 : index
    %15 = vector.load %arg2[%c0_4, %c0_5] : memref<1x16xf32, #tpu.memory_space<vmem>>, vector<1x16xf32>
    tpu.vector_store %arg2[%c0_4, %c0_5], %14 {strides = array<i32>} : memref<1x16xf32, #tpu.memory_space<vmem>>, vector<1x16xf32>,
    return
  }
}

</mosaic_0001>

<llo_original>
// kernel: tpu_custom_call.1
$region0: #{tpu_custom_call.1}
  #allocation0 [shape = 'u32[]', space=smem, size = 0x4, offset = 0x4, fixed_abs, tag = 'smem constant byte address 0x4 - core index']
  #allocation1 [shape = 'u32[144,128]{1,0:T(1,128)}', space=vmem, size = 0x12000, scoped, tag = 'internal scratch']
  %s0 = inlined_call_operand.hbm [shape: f32[1,8], index: 0, kind: input, shape index: {}]
  %s1 = inlined_call_operand.vmem [shape: f32[1,8], index: 1, kind: input, shape index: {}]
  %s2 = inlined_call_operand.hbm [shape: f32[1,16], index: 2, kind: output, shape index: {}]
  %s3 = sld [smem:[#allocation0]]
  $region22: #{tpu_custom_call.1} parent=0
    _
  %s5 = ssub.s32 1, %s3
  %s6 = scalar_select 0, %s5, %s3
  $region1: #{tpu_custom_call.1} parent=0
    #allocation2 [shape = 'u8[512]{0}', space=vmem, size = 0x400, scoped, tag = 'input window, operand 0, single buffered']
    #allocation3 [shape = 's32[1]{0}', space=sflag, size = 0x4, scoped, tag = 'scoped memory for tpu_custom_call.1']
    #allocation4 [shape = 's32[1]{0}', space=sflag, size = 0x4, scoped, tag = 'scoped memory for tpu_custom_call.1']
    #allocation5 [shape = 'u8[512]{0}', space=vmem, size = 0x400, scoped, tag = 'output window, operand 0, single buffered']
    %7 = vsyncpa [#allocation3], 0
    %8 = vsyncpa [#allocation4], 0
    // Predicated region
    $region2: #{tpu_custom_call.1} parent=1 // pred_check
      _
    $region3: #{tpu_custom_call.1} parent=1 // pred_check_branch
      %10 = sbr.rel (0) target = $region5
    $region4: #{tpu_custom_call.1} parent=1 // pred_region
      %s12 = ssub.s32 16, 16
      %13 = vsyncadd [#allocation3], %s12
      %s15 = sshll.u32 [#allocation2], 4
      %s16 = int_to_ptr.vmem [resolvable:$true] %s15
      %18 = dma.hbm_to_vmem [thread:$0]  %s0, 16, %s16, [#allocation3]
    $region5: #{tpu_custom_call.1} parent=1 // pred_fallthru
      _
    // Predicated region
    $region6: #{tpu_custom_call.1} parent=1 // pred_check
      _
    $region7: #{tpu_custom_call.1} parent=1 // pred_check_branch
      %20 = sbr.rel (0) target = $region9
    $region8: #{tpu_custom_call.1} parent=1 // pred_region
      _
    $region9: #{tpu_custom_call.1} parent=1 // pred_fallthru
      _
    // Predicated region
    $region10: #{tpu_custom_call.1} parent=1 // pred_check
      _
    $region11: #{tpu_custom_call.1} parent=1 // pred_check_branch
      %22 = sbr.rel (0) target = $region13
    $region12: #{tpu_custom_call.1} parent=1 // pred_region
      %23 = dma.done [#allocation3], 16
    $region13: #{tpu_custom_call.1} parent=1 // pred_fallthru
      _
    %v24 = vld [vmem:[#allocation2] sm:$0x1]
    %v25 = vld [vmem:[%s1] sm:$0x1]
    %v27 = vlaneseq
    %v28 = vshrl.u32 %v27, 7
    %v29 = vsub.s32 0, %v28
    %v30 = vrot.slane %v25, %v29
    %31 = vrot.lane.b32.xlu0 %v30, 8
    %v32 = vpop.permute.xlu0 %31
    %vm34 = vcmask 64512
    %v35 = vsel %vm34, %v24, %v32
    %v36 = vlaneseq
    %v37 = vand.u32 %v36, 127
    %vm38 = vcmp.eq.s32.totalorder %v37, 0
    %vm39 = vcmp.eq.s32.totalorder %v37, 9
    %v40 = vsel %vm39, 10, 0
    %v41 = vsel %vm38, 5, %v40
    %v42 = vcvt.s32.f32 %v41
    %v43 = vadd.f32 %v35, %v42
    %vm44 = vcmask 122880
    %45 = vst.msk [vmem:[#allocation5] sm:$0x1] %vm44, %v43
    // Predicated region
    $region14: #{tpu_custom_call.1} parent=1 // pred_check
      _
    $region15: #{tpu_custom_call.1} parent=1 // pred_check_branch
      %47 = sbr.rel (0) target = $region17
    $region16: #{tpu_custom_call.1} parent=1 // pred_region
      %s49 = ssub.s32 16, 16
      %50 = vsyncadd [#allocation4], %s49
      %s52 = sshll.u32 [#allocation5], 4
      %s53 = int_to_ptr.vmem [resolvable:$true] %s52
      %55 = dma.vmem_to_hbm [thread:$0]  %s53, 16, %s2, [#allocation4]
    $region17: #{tpu_custom_call.1} parent=1 // pred_fallthru
      _
    // Predicated region
    $region18: #{tpu_custom_call.1} parent=1 // pred_check
      _
    $region19: #{tpu_custom_call.1} parent=1 // pred_check_branch
      %57 = sbr.rel (0) target = $region21
    $region20: #{tpu_custom_call.1} parent=1 // pred_region
      %58 = dma.done [#allocation4], 16
    $region21: #{tpu_custom_call.1} parent=1 // pred_fallthru
      _
    %59 = vsyncpa [#allocation3], 1
    %60 = vsyncpa [#allocation4], 1

</llo_original>
